<compile_context>
chip_gen: v7x
topology: tpu7x:2x2x1
jax: 0.10.0
libtpu: 0.0.40
codegen_flags: <defaults>
</compile_context>

<pallas_src>
import functools

import jax
import jax.numpy as jnp
import numpy as np
from jax.experimental import pallas as pl
from jax.experimental.pallas import tpu as pltpu

EPS = 1e-20          # matches STGumbelSoftmax.EPS
_MAX_TILE_R = 2048   # rows per grid step (multiple of 8)

_COMPILER_PARAMS = pltpu.CompilerParams(
    dimension_semantics=("parallel",),
    vmem_limit_bytes=32 * 1024 * 1024,
)


# ---------------------------------------------------------------------------
# Shared in-kernel math
# ---------------------------------------------------------------------------
def _st_forward(x, u, tau):
    """ST Gumbel-softmax forward on one (tile_r, K) tile; returns f32."""
    # Gumbel noise from uniform(0,1):  -log(-log(u + eps) + eps)
    gumbel = -jnp.log(-jnp.log(u + EPS) + EPS)                    # 2x EUP log
    z = (x.astype(jnp.float32) + gumbel) * (1.0 / tau)
    z_max = jnp.max(z, axis=-1, keepdims=True)                    # XLU reduce
    e = jnp.exp(z - z_max)                                        # EUP exp
    inv_sum = pl.reciprocal(jnp.sum(e, axis=-1, keepdims=True), approx=True)
    y = e * inv_sum                                               # softmax(z)

    # argmax one-hot from z (softmax is monotone); first-max tie-break matches
    # torch.max (first occurrence).
    K = z.shape[-1]
    lane_idx = jax.lax.broadcasted_iota(jnp.int32, z.shape, z.ndim - 1)
    first_idx = jnp.min(jnp.where(z == z_max, lane_idx, K), axis=-1,
                        keepdims=True)
    y_hard = (lane_idx == first_idx).astype(jnp.float32)

    # straight-through combine: (y_hard - y).detach() + y   (forward value)
    return (y_hard - y) + y


def _uniform01(shape):
    """uniform[0,1) f32 from the on-chip PRNG (23-bit mantissa trick)."""
    raw = pltpu.prng_random_bits(shape)
    bits = raw if raw.dtype == jnp.uint32 else pltpu.bitcast(raw, jnp.uint32)
    mant = (bits >> 9) | jnp.uint32(0x3F800000)       # bit pattern in [1, 2)
    return pltpu.bitcast(mant, jnp.float32) - 1.0     # uniform [0, 1)


# ---------------------------------------------------------------------------
# Kernels
# ---------------------------------------------------------------------------
def _st_gumbel_prng_kernel(seed_ref, logits_ref, out_ref, *, tau):
    # Decorrelate tiles: fold the grid position into the seed.
    pltpu.prng_seed(seed_ref[0] + pl.program_id(0))
    u = _uniform01(logits_ref.shape)
    out_ref[...] = _st_forward(logits_ref[...], u, tau).astype(out_ref.dtype)


def _st_gumbel_uniform_kernel(logits_ref, u_ref, out_ref, *, tau):
    out_ref[...] = _st_forward(logits_ref[...], u_ref[...], tau).astype(
        out_ref.dtype)


# ---------------------------------------------------------------------------
# pallas_call wrappers
# ---------------------------------------------------------------------------
def _tiling(R):
    tile_r = R if R <= _MAX_TILE_R else _MAX_TILE_R
    return tile_r, (pl.cdiv(R, tile_r),)


def _call_prng(x, seed, tau):
    R, K = x.shape
    tile_r, grid = _tiling(R)
    spec = pl.BlockSpec((tile_r, K), lambda i, seed_ref: (i, 0))
    return pl.pallas_call(
        functools.partial(_st_gumbel_prng_kernel, tau=float(tau)),
        out_shape=jax.ShapeDtypeStruct((R, K), x.dtype),
        grid_spec=pltpu.PrefetchScalarGridSpec(
            num_scalar_prefetch=1,       # seed -> SMEM
            grid=grid,
            in_specs=[spec],
            out_specs=spec,
        ),
        compiler_params=_COMPILER_PARAMS,
    )(seed, x)


def _call_uniform(x, u, tau):
    R, K = x.shape
    tile_r, grid = _tiling(R)
    spec = pl.BlockSpec((tile_r, K), lambda i: (i, 0))
    return pl.pallas_call(
        functools.partial(_st_gumbel_uniform_kernel, tau=float(tau)),
        out_shape=jax.ShapeDtypeStruct((R, K), x.dtype),
        grid=grid,
        in_specs=[spec, spec],
        out_specs=spec,
        compiler_params=_COMPILER_PARAMS,
    )(x, u)


@functools.cache
def _inkernel_prng_available():
    """True iff pltpu.prng_seed / prng_random_bits lower & run correctly here."""
    try:
        out = _call_prng(jnp.zeros((8, 32), jnp.float32),
                         jnp.zeros((1,), jnp.int32), 1.0)
        out = np.asarray(jax.block_until_ready(out))
        return bool(np.all(np.isfinite(out)) and
                    np.allclose(out.sum(axis=-1), 1.0, atol=1e-3))
    except Exception:
        return False


# ---------------------------------------------------------------------------
# Public API
# ---------------------------------------------------------------------------
def st_gumbel_softmax(logits, noise_key, tau=1.0):
    """Forward pass of STGumbelSoftmax; softmax/argmax axis is the last one."""
    orig_shape = logits.shape
    K = orig_shape[-1]
    R = int(np.prod(orig_shape[:-1])) if len(orig_shape) > 1 else 1
    x = logits.reshape(R, K)                      # native dtype for HBM I/O

    if _inkernel_prng_available():
        # Uniform noise generated on-chip: no noise HBM stream at all.
        seed = jax.random.randint(noise_key, (1,), 0, np.iinfo(np.int32).max,
                                  dtype=jnp.int32)
        out = _call_prng(x, seed, tau)
    else:
        # TODO(synk): drop this fallback once the TPU PRNG primitives lower in
        # every environment the harness uses (interpret path included).
        u = jax.random.uniform(noise_key, (R, K), dtype=jnp.float32)
        out = _call_uniform(x, u, tau)
    return out.reshape(orig_shape)


def st_gumbel_softmax_with_uniform(logits, u, tau=1.0):
    """Deterministic variant: caller supplies the torch.rand-equivalent u."""
    orig_shape = logits.shape
    K = orig_shape[-1]
    R = int(np.prod(orig_shape[:-1])) if len(orig_shape) > 1 else 1
    out = _call_uniform(logits.reshape(R, K),
                        u.astype(jnp.float32).reshape(R, K), tau)
    return out.reshape(orig_shape)


def _st_gumbel_ref_from_uniform(logits, u, tau=1.0):
    """Pure-JAX reference mirroring the PyTorch module's forward."""
    g = -jnp.log(-jnp.log(u.astype(jnp.float32) + EPS) + EPS)
    z = (logits.astype(jnp.float32) + g) / tau
    y = jax.nn.softmax(z, axis=-1)
    idx = jnp.argmax(z, axis=-1)                  # == argmax(softmax(z))
    y_hard = jax.nn.one_hot(idx, logits.shape[-1], dtype=jnp.float32)
    return ((y_hard - y) + y).astype(logits.dtype)


if __name__ == "__main__":
    key = jax.random.PRNGKey(0)
    k_logits, k_noise = jax.random.split(key)

    # module has no weights; logits shape chosen as (batch=2, seq=8, hidden=32)
    logits = jax.random.normal(k_logits, (2, 8, 32), dtype=jnp.float32)

    # 1) Deterministic math check: kernel vs pure-JAX reference, same uniforms.
    u = jax.random.uniform(k_noise, logits.shape, dtype=jnp.float32)
    out_det = jax.block_until_ready(
        st_gumbel_softmax_with_uniform(logits, u, tau=1.0))
    ref = jax.block_until_ready(_st_gumbel_ref_from_uniform(logits, u, tau=1.0))
    assert out_det.shape == logits.shape
    assert np.allclose(np.asarray(out_det), np.asarray(ref), atol=1e-4)

    # 2) Main entry point (on-chip PRNG when available, fallback otherwise).
    out = jax.block_until_ready(st_gumbel_softmax(logits, k_noise, tau=1.0))
    flat = np.asarray(out).reshape(-1, out.shape[-1])
    assert out.shape == logits.shape
    # straight-through forward value is (numerically) one-hot
    assert np.allclose(flat.sum(axis=-1), 1.0, atol=1e-4)
    assert np.allclose(flat.max(axis=-1), 1.0, atol=1e-4)

    print("KERNEL_OK")
</pallas_src>

<mosaic_0001>
module attributes {stable_mosaic.version = 11 : i64} {
  func.func @_st_gumbel_uniform_kernel(%arg0: i32, %arg1: memref<16x32xf32, #tpu.memory_space<vmem>>, %arg2: memref<16x32xf32, #tpu.memory_space<vmem>>, %arg3: memref<16x32xf32, #tpu.memory_space<vmem>>) attributes {dimension_semantics = [#tpu.dimension_semantics<parallel>], iteration_bounds = array<i64: 1>, scalar_prefetch = 0 : i64, scratch_operands = 0 : i64, tpu.core_type = #tpu.core_type<tc>, window_params = [{transform_indices = @transform_0, window_bounds = array<i64: 16, 32>}, {transform_indices = @transform_1, window_bounds = array<i64: 16, 32>}, {transform_indices = @transform_2, window_bounds = array<i64: 16, 32>}]} {
    %c0 = arith.constant 0 : index
    %c0_0 = arith.constant 0 : index
    %0 = vector.load %arg1[%c0, %c0_0] : memref<16x32xf32, #tpu.memory_space<vmem>>, vector<16x32xf32>
    %c0_1 = arith.constant 0 : index
    %c0_2 = arith.constant 0 : index
    %1 = vector.load %arg2[%c0_1, %c0_2] : memref<16x32xf32, #tpu.memory_space<vmem>>, vector<16x32xf32>
    %cst = arith.constant 9.99999968E-21 : f32
    %2 = vector.broadcast %cst : f32 to vector<16x32xf32>
    %3 = arith.addf %1, %2 : vector<16x32xf32>
    %4 = math.log %3 : vector<16x32xf32>
    %cst_3 = arith.constant 0.000000e+00 : f32
    %5 = vector.broadcast %cst_3 : f32 to vector<16x32xf32>
    %6 = arith.subf %5, %4 : vector<16x32xf32>
    %cst_4 = arith.constant 9.99999968E-21 : f32
    %7 = vector.broadcast %cst_4 : f32 to vector<16x32xf32>
    %8 = arith.addf %6, %7 : vector<16x32xf32>
    %9 = math.log %8 : vector<16x32xf32>
    %cst_5 = arith.constant 0.000000e+00 : f32
    %10 = vector.broadcast %cst_5 : f32 to vector<16x32xf32>
    %11 = arith.subf %10, %9 : vector<16x32xf32>
    %12 = arith.addf %0, %11 : vector<16x32xf32>
    %cst_6 = arith.constant 1.000000e+00 : f32
    %13 = vector.broadcast %cst_6 : f32 to vector<16x32xf32>
    %14 = arith.mulf %12, %13 : vector<16x32xf32>
    %cst_7 = arith.constant dense<0xFF800000> : vector<16xf32>
    %15 = vector.multi_reduction <maximumf>, %14, %cst_7 [1] : vector<16x32xf32> to vector<16xf32>
    %16 = vector.shape_cast %15 : vector<16xf32> to vector<16x1xf32>
    %17 = vector.broadcast %16 : vector<16x1xf32> to vector<16x32xf32>
    %18 = arith.subf %14, %17 : vector<16x32xf32>
    %19 = math.exp %18 : vector<16x32xf32>
    %cst_8 = arith.constant dense<0.000000e+00> : vector<16xf32>
    %20 = vector.multi_reduction <add>, %19, %cst_8 [1] : vector<16x32xf32> to vector<16xf32>
    %21 = vector.shape_cast %20 : vector<16xf32> to vector<16x1xf32>
    %22 = tpu.reciprocal %21 {approx = true} : vector<16x1xf32> -> vector<16x1xf32>
    %23 = vector.broadcast %22 : vector<16x1xf32> to vector<16x32xf32>
    %24 = arith.mulf %19, %23 : vector<16x32xf32>
    %25 = tpu.iota {dimensions = array<i32: 1>} : vector<16x32xi32>
    %26 = vector.broadcast %16 : vector<16x1xf32> to vector<16x32xf32>
    %27 = arith.cmpf oeq, %14, %26 : vector<16x32xf32>
    %c32_i32 = arith.constant 32 : i32
    %28 = vector.broadcast %c32_i32 : i32 to vector<16x32xi32>
    %29 = arith.select %27, %25, %28 : vector<16x32xi1>, vector<16x32xi32>
    %cst_9 = arith.constant dense<2147483647> : vector<16xi32>
    %30 = vector.multi_reduction <minsi>, %29, %cst_9 [1] : vector<16x32xi32> to vector<16xi32>
    %31 = vector.shape_cast %30 : vector<16xi32> to vector<16x1xi32>
    %32 = vector.broadcast %31 : vector<16x1xi32> to vector<16x32xi32>
    %33 = arith.cmpi eq, %25, %32 : vector<16x32xi32>
    %34 = arith.extui %33 : vector<16x32xi1> to vector<16x32xi32>
    %35 = arith.sitofp %34 : vector<16x32xi32> to vector<16x32xf32>
    %36 = arith.subf %35, %24 : vector<16x32xf32>
    %37 = arith.addf %36, %24 : vector<16x32xf32>
    %c0_10 = arith.constant 0 : index
    %c0_11 = arith.constant 0 : index
    %38 = vector.load %arg3[%c0_10, %c0_11] : memref<16x32xf32, #tpu.memory_space<vmem>>, vector<16x32xf32>
    tpu.vector_store %arg3[%c0_10, %c0_11], %37 {strides = array<i32>} : memref<16x32xf32, #tpu.memory_space<vmem>>, vector<16x32xf32>,
    return
  }
  func.func @transform_0(%arg0: i32) -> (i32, i32) {
    %c0_i32 = arith.constant 0 : i32
    %c0_i32_0 = arith.constant 0 : i32
    return %arg0, %c0_i32 : i32, i32
  }
  func.func @transform_1(%arg0: i32) -> (i32, i32) {
    %c0_i32 = arith.constant 0 : i32
    %c0_i32_0 = arith.constant 0 : i32
    return %arg0, %c0_i32 : i32, i32
  }
  func.func @transform_2(%arg0: i32) -> (i32, i32) {
    %c0_i32 = arith.constant 0 : i32
    %c0_i32_0 = arith.constant 0 : i32
    return %arg0, %c0_i32 : i32, i32
  }
}

</mosaic_0001>

<llo_original>
// kernel: tpu_custom_call.1
$region0: #{tpu_custom_call.1}
  #allocation0 [shape = 'u32[]', space=smem, size = 0x4, offset = 0x4, fixed_abs, tag = 'smem constant byte address 0x4 - core index']
  #allocation1 [shape = 'u32[144,128]{1,0:T(1,128)}', space=vmem, size = 0x12000, scoped, tag = 'internal scratch']
  %s0 = inlined_call_operand.hbm [shape: f32[16,32], index: 0, kind: input, shape index: {}]
  %s1 = inlined_call_operand.hbm [shape: f32[16,32], index: 1, kind: input, shape index: {}]
  %s2 = inlined_call_operand.hbm [shape: f32[16,32], index: 2, kind: output, shape index: {}]
  %s3 = sld [smem:[#allocation0]]
  $region26: #{tpu_custom_call.1} parent=0
    _
  %s5 = ssub.s32 1, %s3
  %s6 = scalar_select 0, %s5, %s3
  $region1: #{tpu_custom_call.1} parent=0
    #allocation2 [shape = 'u8[8192]{0}', space=vmem, size = 0x2000, scoped, tag = 'input window, operand 0, single buffered']
    #allocation3 [shape = 's32[1]{0}', space=sflag, size = 0x4, scoped, tag = 'scoped memory for tpu_custom_call.1']
    #allocation4 [shape = 's32[1]{0}', space=sflag, size = 0x4, scoped, tag = 'scoped memory for tpu_custom_call.1']
    #allocation5 [shape = 'u8[8192]{0}', space=vmem, size = 0x2000, scoped, tag = 'input window, operand 1, single buffered']
    #allocation6 [shape = 's32[1]{0}', space=sflag, size = 0x4, scoped, tag = 'scoped memory for tpu_custom_call.1']
    #allocation7 [shape = 'u8[8192]{0}', space=vmem, size = 0x2000, scoped, tag = 'output window, operand 0, single buffered']
    %7 = vsyncpa [#allocation3], 0
    %8 = vsyncpa [#allocation6], 0
    %9 = vsyncpa [#allocation4], 0
    // Predicated region
    $region2: #{tpu_custom_call.1} parent=1 // pred_check
      _
    $region3: #{tpu_custom_call.1} parent=1 // pred_check_branch
      %11 = sbr.rel (0) target = $region5
    $region4: #{tpu_custom_call.1} parent=1 // pred_region
      %s13 = ssub.s32 256, 256
      %14 = vsyncadd [#allocation3], %s13
      %s15 = sshll.u32 [#allocation2], 4
      %s16 = int_to_ptr.vmem [resolvable:$true] %s15
      %21 = dma.hbm_to_vmem [thread:$0]  %s0, 256, %s16, [#allocation3], 128, 128, 8
    $region5: #{tpu_custom_call.1} parent=1 // pred_fallthru
      _
    // Predicated region
    $region6: #{tpu_custom_call.1} parent=1 // pred_check
      _
    $region7: #{tpu_custom_call.1} parent=1 // pred_check_branch
      %23 = sbr.rel (0) target = $region9
    $region8: #{tpu_custom_call.1} parent=1 // pred_region
      %s25 = ssub.s32 256, 256
      %26 = vsyncadd [#allocation6], %s25
      %s27 = sshll.u32 [#allocation5], 4
      %s28 = int_to_ptr.vmem [resolvable:$true] %s27
      %33 = dma.hbm_to_vmem [thread:$0]  %s1, 256, %s28, [#allocation6], 128, 128, 8
    $region9: #{tpu_custom_call.1} parent=1 // pred_fallthru
      _
    // Predicated region
    $region10: #{tpu_custom_call.1} parent=1 // pred_check
      _
    $region11: #{tpu_custom_call.1} parent=1 // pred_check_branch
      %35 = sbr.rel (0) target = $region13
    $region12: #{tpu_custom_call.1} parent=1 // pred_region
      %36 = dma.done [#allocation3], 256
    $region13: #{tpu_custom_call.1} parent=1 // pred_fallthru
      _
    // Predicated region
    $region14: #{tpu_custom_call.1} parent=1 // pred_check
      _
    $region15: #{tpu_custom_call.1} parent=1 // pred_check_branch
      %38 = sbr.rel (0) target = $region17
    $region16: #{tpu_custom_call.1} parent=1 // pred_region
      %39 = dma.done [#allocation6], 256
    $region17: #{tpu_custom_call.1} parent=1 // pred_fallthru
      _
    %v40 = vld [vmem:[#allocation2] sm:$0xff]
    %v41 = vld [vmem:[#allocation2 + $0x8] sm:$0xff]
    %v42 = vld [vmem:[#allocation5] sm:$0xff]
    %v43 = vld [vmem:[#allocation5 + $0x8] sm:$0xff]
    %v44 = vadd.f32 %v42, 1e-20
    %v45 = vadd.f32 %v43, 1e-20
    %v46 = vlog2.pop %v44
    %v47 = vmul.f32 %v46, 0.6931472
    %v48 = vlog2.pop %v45
    %v49 = vmul.f32 %v48, 0.6931472
    %v50 = vsub.f32 0.0, %v47
    %v51 = vsub.f32 0.0, %v49
    %v52 = vadd.f32 %v50, 1e-20
    %v53 = vadd.f32 %v51, 1e-20
    %v54 = vlog2.pop %v52
    %v55 = vmul.f32 %v54, 0.6931472
    %v56 = vlog2.pop %v53
    %v57 = vmul.f32 %v56, 0.6931472
    %v58 = vsub.f32 0.0, %v55
    %v59 = vsub.f32 0.0, %v57
    %v60 = vadd.f32 %v40, %v58
    %v61 = vadd.f32 %v41, %v59
    %vm62 = vcmask 261120
    %v63 = vsel %vm62, %v60, -inf
    %64 = vmax.xlane.f32.xlu0 %v63
    %v65 = vpop.xlane.xlu0 %64
    %v66 = vsel %vm62, %v61, -inf
    %67 = vmax.xlane.f32.xlu0 %v66
    %v68 = vpop.xlane.xlu0 %67
    %v69 = vsub.f32 %v60, %v65
    %v70 = vsub.f32 %v61, %v68
    %v71 = vmul.f32 %v69, 1.442695
    %v72 = vpow.pop %v71
    %v73 = vmul.f32 %v70, 1.442695
    %v74 = vpow.pop %v73
    %v75 = vsel %vm62, %v72, 0.0
    %76 = vadd.xlane.f32.xlu0 %v75
    %v77 = vpop.xlane.xlu0 %76
    %v78 = vsel %vm62, %v74, 0.0
    %79 = vadd.xlane.f32.xlu0 %v78
    %v80 = vpop.xlane.xlu0 %79
    %v81 = vrcp.pop %v77
    %v82 = vrcp.pop %v80
    %v83 = vmul.f32 %v72, %v81
    %v84 = vmul.f32 %v74, %v82
    %v85 = vlaneseq
    %v86 = vand.u32 %v85, 127
    %vm87 = vcmp.eq.f32.partialorder %v60, %v65
    %vm88 = vcmp.eq.f32.partialorder %v61, %v68
    %v89 = vsel %vm87, %v86, 32
    %v90 = vsel %vm88, %v86, 32
    %v91 = vsel %vm62, %v89, 2147483647
    %v92 = vand.u32 %v91, 65535
    %v93 = vshra.s32 %v91, 16
    %v94 = vcvt.s32.f32 %v92
    %v95 = vcvt.s32.f32 %v93
    %96 = vmin.xlane.f32.xlu0 %v95
    %v97 = vpop.xlane.xlu0 %96
    %vm98 = vcmp.eq.f32.partialorder %v95, %v97
    %v99 = vsel %vm98, %v94, inf
    %100 = vmin.xlane.f32.xlu0 %v99
    %v101 = vpop.xlane.xlu0 %100
    %v102 = vcvt.f32.s32 %v101
    %v103 = vcvt.f32.s32 %v97
    %v104 = vshll.u32 %v103, 16
    %v105 = vadd.s32 %v104, %v102
    %v106 = vsel %vm62, %v90, 2147483647
    %v107 = vand.u32 %v106, 65535
    %v108 = vshra.s32 %v106, 16
    %v109 = vcvt.s32.f32 %v107
    %v110 = vcvt.s32.f32 %v108
    %111 = vmin.xlane.f32.xlu0 %v110
    %v112 = vpop.xlane.xlu0 %111
    %vm113 = vcmp.eq.f32.partialorder %v110, %v112
    %v114 = vsel %vm113, %v109, inf
    %115 = vmin.xlane.f32.xlu0 %v114
    %v116 = vpop.xlane.xlu0 %115
    %v117 = vcvt.f32.s32 %v116
    %v118 = vcvt.f32.s32 %v112
    %v119 = vshll.u32 %v118, 16
    %v120 = vadd.s32 %v119, %v117
    %vm121 = vcmp.eq.s32.totalorder %v86, %v105
    %vm122 = vcmp.eq.s32.totalorder %v86, %v120
    %v123 = vsel %vm121, 1, 0
    %v124 = vsel %vm122, 1, 0
    %v125 = vcvt.s32.f32 %v123
    %v126 = vcvt.s32.f32 %v124
    %v127 = vsub.f32 %v125, %v83
    %v128 = vsub.f32 %v126, %v84
    %v129 = vadd.f32 %v127, %v83
    %v130 = vadd.f32 %v128, %v84
    %131 = vst.msk [vmem:[#allocation7] sm:$0xff] %vm62, %v129
    %132 = vst.msk [vmem:[#allocation7 + $0x8] sm:$0xff] %vm62, %v130
    // Predicated region
    $region18: #{tpu_custom_call.1} parent=1 // pred_check
      _
    $region19: #{tpu_custom_call.1} parent=1 // pred_check_branch
      %134 = sbr.rel (0) target = $region21
    $region20: #{tpu_custom_call.1} parent=1 // pred_region
      %s136 = ssub.s32 256, 256
      %137 = vsyncadd [#allocation4], %s136
      %s138 = sshll.u32 [#allocation7], 4
      %s139 = int_to_ptr.vmem [resolvable:$true] %s138
      %144 = dma.vmem_to_hbm [thread:$0]  %s139, 256, %s2, [#allocation4], 128, 128, 8
    $region21: #{tpu_custom_call.1} parent=1 // pred_fallthru
      _
    // Predicated region
    $region22: #{tpu_custom_call.1} parent=1 // pred_check
      _
    $region23: #{tpu_custom_call.1} parent=1 // pred_check_branch
      %146 = sbr.rel (0) target = $region25
    $region24: #{tpu_custom_call.1} parent=1 // pred_region
      %147 = dma.done [#allocation4], 256
    $region25: #{tpu_custom_call.1} parent=1 // pred_fallthru
      _
    %148 = vsyncpa [#allocation3], 1
    %149 = vsyncpa [#allocation6], 1
    %150 = vsyncpa [#allocation4], 1

</llo_original>
